<compile_context>
chip_gen: v5e
topology: v5e:2x2
jax: 0.10.0
libtpu: 0.0.40
codegen_flags: <defaults>
</compile_context>

<pallas_src>
import jax
import jax.numpy as jnp
from jax.experimental import pallas as pl
from jax.experimental.pallas import tpu as pltpu

CLAMP_MIN = 0.5    # torch.clamp_min(v2, self.min), min = 0.5
CLAMP_MAX = -5.0   # torch.clamp_max(v3, self.max), max = -5

_LANES = 128
_SUBLANES = 8
_MAX_S_TILE = 4096      # (1,2,4096,128) f32 block = 4 MiB/array; 2 arrays x 2 bufs = 16 MiB
_PALLAS_MIN_M = 128     # below one lane-tile of output work, fused XLA wins


# ---------------- fused Pallas kernel ----------------

def _fused_affine_clamp_kernel(wb_ref, x_ref, o_ref):
    # wb_ref : SMEM (6,) f32 = [w00, w01, b0, w10, w11, b1]
    # x_ref  : VMEM (1, 2, s_tile, 128)  stride-4-subsampled input, dense slabs
    # o_ref  : VMEM (1, 2, s_tile, 128)
    x0 = x_ref[0, 0, :, :]            # (s_tile, 128) — full sublane/lane occupancy
    x1 = x_ref[0, 1, :, :]
    y0 = x0 * wb_ref[0] + x1 * wb_ref[1] + wb_ref[2]
    y1 = x0 * wb_ref[3] + x1 * wb_ref[4] + wb_ref[5]
    y0 = jnp.minimum(jnp.maximum(y0, CLAMP_MIN), CLAMP_MAX)
    y1 = jnp.minimum(jnp.maximum(y1, CLAMP_MIN), CLAMP_MAX)
    o_ref[0, 0, :, :] = y0            # full-tile unmasked stores
    o_ref[0, 1, :, :] = y1


def _choose_tiling(M, N):
    """Pick (S_pad, s_tile): spatial rows of 128 lanes, padded + tiled."""
    S = -(-M // _LANES)                       # ceil(M / 128)
    S = -(-S // _SUBLANES) * _SUBLANES        # round up to sublane multiple of 8
    n_tiles = -(-S // _MAX_S_TILE)
    if N == 1 and n_tiles == 1 and S % (2 * _SUBLANES) == 0:
        n_tiles = 2                           # keep both v7x TensorCores busy
    s_tile = -(-S // n_tiles)
    s_tile = -(-s_tile // _SUBLANES) * _SUBLANES
    S_pad = -(-S // s_tile) * s_tile
    return S_pad, s_tile


# ---------------- wrapper ----------------

@jax.jit
def model_forward(x_nchw, w1, b1, w2, b2):
    """x_nchw: (N, 2, H, W) f32.  Returns NCHW output of the two convs + clamps."""
    N, C, H, W = x_nchw.shape

    # Two chained stride-2 1x1 convs == one stride-4 subsample + channel affine.
    # (wrapper-side XLA strided gather of a 16x-smaller array — acknowledged.)
    xs = x_nchw[:, :, ::4, ::4]
    Ho, Wo = xs.shape[2], xs.shape[3]
    M = Ho * Wo
    x_flat = xs.reshape(N, C, M)

    # Fold depthwise conv2 into conv1.
    w_fold = (w2[:, None] * w1).astype(jnp.float32)     # (C, C)
    b_fold = (w2 * b1 + b2).astype(jnp.float32)         # (C,)

    if M < _PALLAS_MIN_M:
        # Tiny problem (e.g. the module's 1x2x8x8): launch + grid overhead
        # dwarfs the work — let XLA fuse the elementwise expression.
        y = jnp.einsum("oc,ncm->nom", w_fold, x_flat) + b_fold[None, :, None]
        y = jnp.minimum(jnp.maximum(y, CLAMP_MIN), CLAMP_MAX)
        return y.reshape(N, C, Ho, Wo)

    wb = jnp.concatenate([w_fold, b_fold[:, None]], axis=1).reshape(-1)   # (6,) flat SMEM

    S_pad, s_tile = _choose_tiling(M, N)
    M_pad = S_pad * _LANES
    x_pad = jnp.pad(x_flat, ((0, 0), (0, 0), (0, M_pad - M)))
    x_tiles = x_pad.reshape(N, C, S_pad, _LANES)

    grid = (N, S_pad // s_tile)

    out = pl.pallas_call(
        _fused_affine_clamp_kernel,
        out_shape=jax.ShapeDtypeStruct((N, C, S_pad, _LANES), jnp.float32),
        grid=grid,
        in_specs=[
            pl.BlockSpec(memory_space=pltpu.MemorySpace.SMEM),             # folded (6,) wb
            pl.BlockSpec((1, C, s_tile, _LANES), lambda n, s: (n, 0, s, 0)),
        ],
        out_specs=pl.BlockSpec((1, C, s_tile, _LANES), lambda n, s: (n, 0, s, 0)),
        compiler_params=pltpu.CompilerParams(
            dimension_semantics=("parallel", "parallel"),
            vmem_limit_bytes=32 * 1024 * 1024),
    )(wb, x_tiles)

    return out.reshape(N, C, M_pad)[:, :, :M].reshape(N, C, Ho, Wo)


# ---------------- pure-jnp reference (mirrors torch op-by-op) ----------------

def model_forward_ref(x, w1, b1, w2, b2):
    v1 = jnp.einsum("oc,nchw->nohw", w1, x[:, :, ::2, ::2]) + b1[None, :, None, None]
    v2 = v1[:, :, ::2, ::2] * w2[None, :, None, None] + b2[None, :, None, None]
    v3 = jnp.maximum(v2, CLAMP_MIN)
    return jnp.minimum(v3, CLAMP_MAX)


if __name__ == "__main__":
    key = jax.random.PRNGKey(0)
    kx, k1, k2, k3, k4, kx2 = jax.random.split(key, 6)

    C = 2
    # conv1: Conv2d(2, 2, 1) -> weight (2, 2), bias (2,)
    w1 = jax.random.normal(k1, (C, C), dtype=jnp.float32) * 0.5
    b1 = jax.random.normal(k2, (C,), dtype=jnp.float32) * 0.1
    # conv2: Conv2d(2, 2, 1, groups=2) -> depthwise weight (2,), bias (2,)
    w2 = jax.random.normal(k3, (C,), dtype=jnp.float32) * 0.5
    b2 = jax.random.normal(k4, (C,), dtype=jnp.float32) * 0.1

    # Pallas path: batch=2, 2 channels, 128x128 spatial
    x_big = jax.random.normal(kx, (2, C, 128, 128), dtype=jnp.float32)
    out_big = jax.block_until_ready(model_forward(x_big, w1, b1, w2, b2))
    ref_big = model_forward_ref(x_big, w1, b1, w2, b2)
    assert out_big.shape == (2, C, 32, 32), out_big.shape
    assert jnp.allclose(out_big, ref_big, atol=1e-5, rtol=1e-5)

    # Pallas path, N=1 (spatial axis split into 2 tiles for v7x's two TCs)
    x_n1 = jax.random.normal(kx2, (1, C, 512, 512), dtype=jnp.float32)
    out_n1 = jax.block_until_ready(model_forward(x_n1, w1, b1, w2, b2))
    ref_n1 = model_forward_ref(x_n1, w1, b1, w2, b2)
    assert out_n1.shape == (1, C, 128, 128), out_n1.shape
    assert jnp.allclose(out_n1, ref_n1, atol=1e-5, rtol=1e-5)

    # Original module shape (1, 2, 8, 8): tiny -> fused-XLA dispatch path
    x_tiny = jax.random.normal(kx, (1, C, 8, 8), dtype=jnp.float32)
    out_tiny = jax.block_until_ready(model_forward(x_tiny, w1, b1, w2, b2))
    ref_tiny = model_forward_ref(x_tiny, w1, b1, w2, b2)
    assert out_tiny.shape == (1, C, 2, 2), out_tiny.shape
    assert jnp.allclose(out_tiny, ref_tiny, atol=1e-5, rtol=1e-5)

    print("KERNEL_OK")
</pallas_src>

<mosaic_0001>
module attributes {stable_mosaic.version = 11 : i64} {
  func.func @_fused_affine_clamp_kernel(%arg0: i32, %arg1: i32, %arg2: memref<6xf32, #tpu.memory_space<smem>>, %arg3: memref<1x2x8x128xf32, #tpu.memory_space<vmem>>, %arg4: memref<1x2x8x128xf32, #tpu.memory_space<vmem>>) attributes {dimension_semantics = [#tpu.dimension_semantics<parallel>, #tpu.dimension_semantics<parallel>], iteration_bounds = array<i64: 2, 1>, scalar_prefetch = 0 : i64, scratch_operands = 0 : i64, tpu.core_type = #tpu.core_type<tc>, window_params = [{transform_indices = @transform_0, window_bounds = array<i64: 6>}, {transform_indices = @transform_1, window_bounds = array<i64: 1, 2, 8, 128>}, {transform_indices = @transform_2, window_bounds = array<i64: 1, 2, 8, 128>}]} {
    %c0 = arith.constant 0 : index
    %c0_0 = arith.constant 0 : index
    %c0_1 = arith.constant 0 : index
    %c0_2 = arith.constant 0 : index
    %0 = vector.load %arg3[%c0, %c0_0, %c0_1, %c0_2] : memref<1x2x8x128xf32, #tpu.memory_space<vmem>>, vector<1x1x8x128xf32>
    %1 = vector.shape_cast %0 : vector<1x1x8x128xf32> to vector<8x128xf32>
    %c0_3 = arith.constant 0 : index
    %c1 = arith.constant 1 : index
    %c0_4 = arith.constant 0 : index
    %c0_5 = arith.constant 0 : index
    %2 = vector.load %arg3[%c0_3, %c1, %c0_4, %c0_5] : memref<1x2x8x128xf32, #tpu.memory_space<vmem>>, vector<1x1x8x128xf32>
    %3 = vector.shape_cast %2 : vector<1x1x8x128xf32> to vector<8x128xf32>
    %c0_6 = arith.constant 0 : index
    %4 = memref.load %arg2[%c0_6] : memref<6xf32, #tpu.memory_space<smem>>
    %5 = vector.broadcast %4 : f32 to vector<8x128xf32>
    %6 = arith.mulf %1, %5 : vector<8x128xf32>
    %c1_7 = arith.constant 1 : index
    %7 = memref.load %arg2[%c1_7] : memref<6xf32, #tpu.memory_space<smem>>
    %8 = vector.broadcast %7 : f32 to vector<8x128xf32>
    %9 = arith.mulf %3, %8 : vector<8x128xf32>
    %10 = arith.addf %6, %9 : vector<8x128xf32>
    %c2 = arith.constant 2 : index
    %11 = memref.load %arg2[%c2] : memref<6xf32, #tpu.memory_space<smem>>
    %12 = vector.broadcast %11 : f32 to vector<8x128xf32>
    %13 = arith.addf %10, %12 : vector<8x128xf32>
    %c3 = arith.constant 3 : index
    %14 = memref.load %arg2[%c3] : memref<6xf32, #tpu.memory_space<smem>>
    %15 = vector.broadcast %14 : f32 to vector<8x128xf32>
    %16 = arith.mulf %1, %15 : vector<8x128xf32>
    %c4 = arith.constant 4 : index
    %17 = memref.load %arg2[%c4] : memref<6xf32, #tpu.memory_space<smem>>
    %18 = vector.broadcast %17 : f32 to vector<8x128xf32>
    %19 = arith.mulf %3, %18 : vector<8x128xf32>
    %20 = arith.addf %16, %19 : vector<8x128xf32>
    %c5 = arith.constant 5 : index
    %21 = memref.load %arg2[%c5] : memref<6xf32, #tpu.memory_space<smem>>
    %22 = vector.broadcast %21 : f32 to vector<8x128xf32>
    %23 = arith.addf %20, %22 : vector<8x128xf32>
    %cst = arith.constant 5.000000e-01 : f32
    %24 = vector.broadcast %cst : f32 to vector<8x128xf32>
    %25 = arith.maximumf %13, %24 : vector<8x128xf32>
    %cst_8 = arith.constant -5.000000e+00 : f32
    %26 = vector.broadcast %cst_8 : f32 to vector<8x128xf32>
    %27 = arith.minimumf %25, %26 : vector<8x128xf32>
    %cst_9 = arith.constant 5.000000e-01 : f32
    %28 = vector.broadcast %cst_9 : f32 to vector<8x128xf32>
    %29 = arith.maximumf %23, %28 : vector<8x128xf32>
    %cst_10 = arith.constant -5.000000e+00 : f32
    %30 = vector.broadcast %cst_10 : f32 to vector<8x128xf32>
    %31 = arith.minimumf %29, %30 : vector<8x128xf32>
    %c0_11 = arith.constant 0 : index
    %c0_12 = arith.constant 0 : index
    %c0_13 = arith.constant 0 : index
    %c0_14 = arith.constant 0 : index
    %32 = vector.load %arg4[%c0_11, %c0_12, %c0_13, %c0_14] : memref<1x2x8x128xf32, #tpu.memory_space<vmem>>, vector<1x1x8x128xf32>
    %33 = vector.shape_cast %32 : vector<1x1x8x128xf32> to vector<8x128xf32>
    %34 = vector.shape_cast %27 : vector<8x128xf32> to vector<1x1x8x128xf32>
    tpu.vector_store %arg4[%c0_11, %c0_12, %c0_13, %c0_14], %34 {strides = array<i32>} : memref<1x2x8x128xf32, #tpu.memory_space<vmem>>, vector<1x1x8x128xf32>,
    %c0_15 = arith.constant 0 : index
    %c1_16 = arith.constant 1 : index
    %c0_17 = arith.constant 0 : index
    %c0_18 = arith.constant 0 : index
    %35 = vector.load %arg4[%c0_15, %c1_16, %c0_17, %c0_18] : memref<1x2x8x128xf32, #tpu.memory_space<vmem>>, vector<1x1x8x128xf32>
    %36 = vector.shape_cast %35 : vector<1x1x8x128xf32> to vector<8x128xf32>
    %37 = vector.shape_cast %31 : vector<8x128xf32> to vector<1x1x8x128xf32>
    tpu.vector_store %arg4[%c0_15, %c1_16, %c0_17, %c0_18], %37 {strides = array<i32>} : memref<1x2x8x128xf32, #tpu.memory_space<vmem>>, vector<1x1x8x128xf32>,
    return
  }
  func.func @transform_0(%arg0: i32, %arg1: i32) -> i32 {
    %c0_i32 = arith.constant 0 : i32
    %c0_i32_0 = arith.constant 0 : i32
    return %c0_i32 : i32
  }
  func.func @transform_1(%arg0: i32, %arg1: i32) -> (i32, i32, i32, i32) {
    %c0_i32 = arith.constant 0 : i32
    %c0_i32_0 = arith.constant 0 : i32
    %c0_i32_1 = arith.constant 0 : i32
    return %arg0, %c0_i32, %arg1, %c0_i32_0 : i32, i32, i32, i32
  }
  func.func @transform_2(%arg0: i32, %arg1: i32) -> (i32, i32, i32, i32) {
    %c0_i32 = arith.constant 0 : i32
    %c0_i32_0 = arith.constant 0 : i32
    %c0_i32_1 = arith.constant 0 : i32
    return %arg0, %c0_i32, %arg1, %c0_i32_0 : i32, i32, i32, i32
  }
}

</mosaic_0001>

<llo_original>
// kernel: model_forward.1
$region0: #{model_forward.1}
  #allocation0 [shape = 'u32[]', space=smem, size = 0x4, offset = 0x4, fixed_abs, tag = 'smem constant byte address 0x4 - core index']
  #allocation1 [shape = 'u32[72,128]{1,0:T(1,128)}', space=vmem, size = 0x9000, scoped, tag = 'internal scratch']
  %s0 = inlined_call_operand.vmem [shape: f32[6], index: 0, kind: input, shape index: {}]
  %s1 = inlined_call_operand.vmem [shape: f32[2,2,8,128], index: 1, kind: input, shape index: {}]
  %s2 = inlined_call_operand.vmem [shape: f32[2,2,8,128], index: 2, kind: output, shape index: {}]
  %s3 = sld [smem:[#allocation0]]
  $region45: #{model_forward.1} parent=0
    _
  %s5 = ssub.s32 1, %s3
  %s6 = scalar_select 0, %s5, %s3
  $region1: #{model_forward.1} parent=0
    #allocation2 [shape = 'u8[512]{0}', space=smem, size = 0x200, scoped, tag = 'input window, operand 0, single buffered']
    #allocation3 [shape = 's32[2]{0}', space=sflag, size = 0x8, scoped, tag = 'scoped memory for model_forward.1']
    %7 = vsyncpa [#allocation3], 0
    loop: start=0, step=1, limit=4
    $region2: #{model_forward.1} parent=1 // loop_pre_header
      _
    $region3: #{model_forward.1} parent=1 // loop_header
      %s9 = sphi 0, %s13
      %p10 = scmp.ge.s32.totalorder %s9, 4
      %s16 = sphi 0, %s28
      %s17 = sphi 0, %s24
      %s18 = sphi 0, %s16
      %s19 = sphi 0, %s17
      %s20 = sphi 0, %s18
      %s21 = sphi 0, %s19
      %s29 = sphi 0, %s29
      %s31 = sphi 0, %s29
      %s32 = sphi 0, %s31
      %s46 = sphi 0, %s32
      %s54 = sphi 0, %s56
      %s57 = sphi 0, %s54
      %s58 = sphi 0, %s57
      %s74 = sphi 0, %s58
      %s82 = sphi 0, %s84
      %s85 = sphi 0, %s82
      %s86 = sphi 0, %s85
      %s102 = sphi 0, %s86
    $region4: #{model_forward.1} parent=1 // loop_header_branch
      %12 = sbr.rel (%p10) target = $region8
    $region5: #{model_forward.1} parent=1 // loop_body
      %s14 = ssub.s32 %s9, 1
      %s15 = ssub.s32 %s9, 2
      %s22 = sadd.s32 1, %s17
      %p23 = scmp.ge.s32.totalorder %s22, 1
      %s24 = scalar_select %p23, 0, %s22
      %s25 = sadd.s32 1, %s16
      %s26 = scalar_select %p23, %s25, %s16
      %p27 = scmp.ge.s32.totalorder %s26, 2
      %s28 = scalar_select %p27, 0, %s26
      %s30 = sadd.s32 %s29, 1
      %p33 = scmp.eq.s32.totalorder %s9, 1
      %p34 = scmp.ne.s32.totalorder %s29, %s31
      %p35 = scmp.eq.s32.totalorder %s9, 0
      %p36 = por %p34, %p35
      %p37 = scmp.ne.s32.totalorder %s29, %s31
      %p38 = scmp.eq.s32.totalorder %s14, 1
      %p39 = por %p37, %p38
      %p40 = scmp.ne.s32.totalorder %s31, %s32
      %p41 = scmp.eq.s32.totalorder %s14, 0
      %p42 = por %p40, %p41
      %p43 = scmp.ne.s32.totalorder %s31, %s32
      %p44 = scmp.eq.s32.totalorder %s15, 1
      %p45 = por %p43, %p44
      %p47 = scmp.ne.s32.totalorder %s32, %s46
      %p48 = scmp.eq.s32.totalorder %s15, 0
      %p49 = por %p47, %p48
      %s50 = ssub.s32 %s16, %s28
      %s51 = ssub.s32 %s17, %s24
      %s52 = sor.u32 %s50, %s51
      %p53 = scmp.eq.s32.totalorder %s52, 0
      %s55 = sadd.s32 %s54, 1
      %s56 = scalar_select %p53, %s54, %s55
      %p59 = pneg %p53
      %p60 = scmp.eq.s32.totalorder %s9, 1
      %p61 = por %p59, %p60
      %p62 = scmp.ne.s32.totalorder %s54, %s57
      %p63 = scmp.eq.s32.totalorder %s9, 0
      %p64 = por %p62, %p63
      %p65 = scmp.ne.s32.totalorder %s54, %s57
      %p66 = scmp.eq.s32.totalorder %s14, 1
      %p67 = por %p65, %p66
      %p68 = scmp.ne.s32.totalorder %s57, %s58
      %p69 = scmp.eq.s32.totalorder %s14, 0
      %p70 = por %p68, %p69
      %p71 = scmp.ne.s32.totalorder %s57, %s58
      %p72 = scmp.eq.s32.totalorder %s15, 1
      %p73 = por %p71, %p72
      %p75 = scmp.ne.s32.totalorder %s58, %s74
      %p76 = scmp.eq.s32.totalorder %s15, 0
      %p77 = por %p75, %p76
      %s78 = ssub.s32 %s16, %s28
      %s79 = ssub.s32 %s17, %s24
      %s80 = sor.u32 %s78, %s79
      %p81 = scmp.eq.s32.totalorder %s80, 0
      %s83 = sadd.s32 %s82, 1
      %s84 = scalar_select %p81, %s82, %s83
      %p87 = pneg %p81
      %p88 = scmp.eq.s32.totalorder %s9, 1
      %p89 = por %p87, %p88
      %p90 = scmp.ne.s32.totalorder %s82, %s85
      %p91 = scmp.eq.s32.totalorder %s9, 0
      %p92 = por %p90, %p91
      %p93 = scmp.ne.s32.totalorder %s82, %s85
      %p94 = scmp.eq.s32.totalorder %s14, 1
      %p95 = por %p93, %p94
      %p96 = scmp.ne.s32.totalorder %s85, %s86
      %p97 = scmp.eq.s32.totalorder %s14, 0
      %p98 = por %p96, %p97
      %p99 = scmp.ne.s32.totalorder %s85, %s86
      %p100 = scmp.eq.s32.totalorder %s15, 1
      %p101 = por %p99, %p100
      %p103 = scmp.ne.s32.totalorder %s86, %s102
      %p104 = scmp.eq.s32.totalorder %s15, 0
      %p105 = por %p103, %p104
      %p106 = scmp.le.s32.totalorder 1, %s9
      %p107 = scmp.lt.s32.totalorder %s9, 3
      %p108 = pnand %p106, %p107
      %p109 = pneg %p108
      // Predicated region
      $region9: #{model_forward.1} parent=5 // pred_check
        _
      $region10: #{model_forward.1} parent=5 // pred_check_branch
        %111 = sbr.rel (%p108) target = $region12
      $region11: #{model_forward.1} parent=5 // pred_region
        %s112 = ssub.s32 %s9, 1
        // Predicated region
        $region13: #{model_forward.1} parent=11 // pred_check
          %p113 = pneg %p42
        $region14: #{model_forward.1} parent=11 // pred_check_branch
          %115 = sbr.rel (%p113) target = $region16
        $region15: #{model_forward.1} parent=11 // pred_region
          %117 = vsyncadd [#allocation3], 0
          %s119 = sshll.u32 %s0, 4
          %s120 = int_to_ptr.vmem [resolvable:$true] %s119
          %122 = dma.vmem_to_smem %s120, 16, [#allocation2], [#allocation3]
        $region16: #{model_forward.1} parent=11 // pred_fallthru
          _
      $region12: #{model_forward.1} parent=5 // pred_fallthru
        _
      %p123 = scmp.lt.s32.totalorder %s9, 2
      // Predicated region
      $region17: #{model_forward.1} parent=5 // pred_check
        %p124 = pneg %p123
      $region18: #{model_forward.1} parent=5 // pred_check_branch
        %126 = sbr.rel (%p124) target = $region20
      $region19: #{model_forward.1} parent=5 // pred_region
        // Predicated region
        $region21: #{model_forward.1} parent=19 // pred_check
          %p127 = pneg %p64
        $region22: #{model_forward.1} parent=19 // pred_check_branch
          %129 = sbr.rel (%p127) target = $region24
        $region23: #{model_forward.1} parent=19 // pred_region
          %p130 = scmp.lt.s32.totalorder %s16, 1
          %s131 = scalar_select %p130, %s16, 1
          %p132 = scmp.lt.s32.totalorder %s17, 0
          %s133 = scalar_select %p132, %s17, 0
          %s134 = smul.addr %s131, 2
          %s135 = sadd.s32 %s133, %s134
          %s136 = smul.addr %s135, 8
          %s137 = scalar_lea.vmem %s1, %s136
        $region24: #{model_forward.1} parent=19 // pred_fallthru
          _
      $region20: #{model_forward.1} parent=5 // pred_fallthru
        _
      %p138 = scmp.le.s32.totalorder 1, %s9
      %p139 = scmp.lt.s32.totalorder %s9, 3
      %p140 = pnand %p138, %p139
      %p141 = pneg %p140
      // Predicated region
      $region25: #{model_forward.1} parent=5 // pred_check
        _
      $region26: #{model_forward.1} parent=5 // pred_check_branch
        %143 = sbr.rel (%p140) target = $region28
      $region27: #{model_forward.1} parent=5 // pred_region
        %s144 = ssub.s32 %s9, 1
        // Predicated region
        $region29: #{model_forward.1} parent=27 // pred_check
          %p145 = pneg %p42
        $region30: #{model_forward.1} parent=27 // pred_check_branch
          %147 = sbr.rel (%p145) target = $region32
        $region31: #{model_forward.1} parent=27 // pred_region
          %149 = dma.done [#allocation3], 16
        $region32: #{model_forward.1} parent=27 // pred_fallthru
          _
        %150 = sfence
        %p151 = pneg %p42
        %p152 = pneg %p39
        %p153 = scmp.lt.s32.totalorder %s18, 1
        %s154 = scalar_select %p153, %s18, 1
        %p155 = scmp.lt.s32.totalorder %s19, 0
        %s156 = scalar_select %p155, %s19, 0
        %s157 = smul.addr %s154, 2
        %s158 = sadd.s32 %s156, %s157
        %s159 = smul.addr %s158, 8
        %s160 = scalar_lea.vmem %s1, %s159
        %p161 = pneg %p70
        %p162 = pneg %p67
        %p163 = pneg %p98
        %p164 = pneg %p95
        %p165 = scmp.lt.s32.totalorder %s18, 1
        %s166 = scalar_select %p165, %s18, 1
        %p167 = scmp.lt.s32.totalorder %s19, 0
        %s168 = scalar_select %p167, %s19, 0
        %s169 = smul.addr %s166, 2
        %s170 = sadd.s32 %s168, %s169
        %s171 = smul.addr %s170, 8
        %s172 = scalar_lea.vmem %s2, %s171
        %p173 = scmp.lt.s32.totalorder %s18, 1
        %s174 = scalar_select %p173, %s18, 1
        %p175 = scmp.lt.s32.totalorder %s19, 0
        %s176 = scalar_select %p175, %s19, 0
        %s177 = smul.addr %s174, 2
        %s178 = sadd.s32 %s176, %s177
        %s179 = smul.addr %s178, 8
        %s180 = scalar_lea.vmem %s1, %s179
        %p181 = scmp.lt.s32.totalorder %s18, 1
        %s182 = scalar_select %p181, %s18, 1
        %p183 = scmp.lt.s32.totalorder %s19, 0
        %s184 = scalar_select %p183, %s19, 0
        %s185 = smul.addr %s182, 2
        %s186 = sadd.s32 %s184, %s185
        %s187 = smul.addr %s186, 8
        %s188 = scalar_lea.vmem %s2, %s187
        %v189 = vld [vmem:[%s180] sm:$0xff]
        %s190 = scalar_lea.vmem %s180, 8
        %v191 = vld [vmem:[%s190] sm:$0xff]
        %s192 = sld [smem:[#allocation2]]
        %v193 = vstv %s192
        %v194 = vmul.f32 %v189, %v193
        %s195 = sld [smem:[#allocation2 + $0x1]]
        %v196 = vstv %s195
        %v197 = vmul.f32 %v191, %v196
        %v198 = vadd.f32 %v194, %v197
        %s199 = sld [smem:[#allocation2 + $0x2]]
        %v200 = vstv %s199
        %v201 = vadd.f32 %v198, %v200
        %s202 = sld [smem:[#allocation2 + $0x3]]
        %v203 = vstv %s202
        %v204 = vmul.f32 %v189, %v203
        %s205 = sld [smem:[#allocation2 + $0x4]]
        %v206 = vstv %s205
        %v207 = vmul.f32 %v191, %v206
        %v208 = vadd.f32 %v204, %v207
        %s209 = sld [smem:[#allocation2 + $0x5]]
        %v210 = vstv %s209
        %v211 = vadd.f32 %v208, %v210
        %v212 = vmax.f32 %v201, 0.5
        %v213 = vmin.f32 %v212, -5.0
        %v214 = vmax.f32 %v211, 0.5
        %v215 = vmin.f32 %v214, -5.0
        %216 = vst [vmem:[%s188] sm:$0xff] %v213
        %s217 = scalar_lea.vmem %s188, 8
        %218 = vst [vmem:[%s217] sm:$0xff] %v215
        %p219 = scmp.lt.s32.totalorder %s18, 1
        %s220 = scalar_select %p219, %s18, 1
        %p221 = scmp.lt.s32.totalorder %s19, 0
        %s222 = scalar_select %p221, %s19, 0
        %s223 = smul.addr %s220, 2
        %s224 = sadd.s32 %s222, %s223
        %s225 = smul.addr %s224, 8
        %s226 = scalar_lea.vmem %s2, %s225
        // Predicated region
        $region33: #{model_forward.1} parent=27 // pred_check
          %p227 = pneg %p95
        $region34: #{model_forward.1} parent=27 // pred_check_branch
          %229 = sbr.rel (%p227) target = $region36
        $region35: #{model_forward.1} parent=27 // pred_region
          _
        $region36: #{model_forward.1} parent=27 // pred_fallthru
          _
      $region28: #{model_forward.1} parent=5 // pred_fallthru
        _
      %p230 = scmp.le.s32.totalorder 2, %s9
      // Predicated region
      $region37: #{model_forward.1} parent=5 // pred_check
        %p231 = pneg %p230
      $region38: #{model_forward.1} parent=5 // pred_check_branch
        %233 = sbr.rel (%p231) target = $region40
      $region39: #{model_forward.1} parent=5 // pred_region
        %s234 = ssub.s32 %s9, 2
        // Predicated region
        $region41: #{model_forward.1} parent=39 // pred_check
          %p235 = pneg %p101
        $region42: #{model_forward.1} parent=39 // pred_check_branch
          %237 = sbr.rel (%p235) target = $region44
        $region43: #{model_forward.1} parent=39 // pred_region
          %p238 = scmp.lt.s32.totalorder %s20, 1
          %s239 = scalar_select %p238, %s20, 1
          %p240 = scmp.lt.s32.totalorder %s21, 0
          %s241 = scalar_select %p240, %s21, 0
          %s242 = smul.addr %s239, 2
          %s243 = sadd.s32 %s241, %s242
          %s244 = smul.addr %s243, 8
          %s245 = scalar_lea.vmem %s2, %s244
        $region44: #{model_forward.1} parent=39 // pred_fallthru
          _
      $region40: #{model_forward.1} parent=5 // pred_fallthru
        _
    $region6: #{model_forward.1} parent=1 // loop_footer
      %s13 = sadd.s32 1, %s9
    $region7: #{model_forward.1} parent=1 // loop_footer_branch
      %8 = sbr.rel target = $region3
    $region8: #{model_forward.1} parent=1 // loop_exit
      _
    %246 = vsyncpa [#allocation3], 1
    %s247 = scalar_lea.sflag [#allocation3], 1
    %248 = vsyncpa %s247, 1

</llo_original>
